<compile_context>
chip_gen: v6e
topology: v6e:2x2x1
jax: 0.10.0
libtpu: 0.0.40
codegen_flags: <defaults>
</compile_context>

<pallas_src>
import jax
import jax.numpy as jnp
from jax.experimental import pallas as pl
from jax.experimental.pallas import tpu as pltpu


def _make_phase_shuffle_kernel(n, T):
    """Kernel that copies a T-wide window at offset (n - k) from the padded tile."""

    def kernel(shift_ref, xp_ref, o_ref):
        b = pl.program_id(0)
        k = shift_ref[b]            # int32 shift for this batch, |k| <= n
        start = n - k               # window start in the padded tile, in [0, 2n]

        xt = xp_ref[0]              # (c_blk, T + 2n) tile, already in VMEM

        # 2n + 1 possible window starts; exactly one branch fires per step
        # (the wrapper clips shifts into [-n, n]).  Each branch is a single
        # static slice + store — pure data movement, no VALU/MXU work.
        for j in range(2 * n + 1):
            @pl.when(start == j)
            def _(j=j):
                o_ref[0] = xt[:, j:j + T]

    return kernel


def _choose_c_block(C, Tp, itemsize, budget_bytes=2 * 1024 * 1024):
    """Channel tile: full C if it fits the budget, else a multiple of 8 that
    divides C.  Keeps double-buffered in+out blocks well under VMEM on v7x."""
    if C * Tp * itemsize <= budget_bytes or C % 8 != 0:
        return C
    cb = min(C, max(8, (budget_bytes // (Tp * itemsize)) // 8 * 8))
    while C % cb != 0:
        cb -= 8
    return max(cb, 8)


def phase_shuffle(x, shifts, n):
    """x: (B, C, T) array.  shifts: (B,) ints in [-n, n]."""
    B, C, T = x.shape
    if n == 0:
        return x
    if n >= T:
        raise ValueError("PhaseShuffle requires n < T (single reflection).")

    shifts = jnp.clip(shifts, -n, n).astype(jnp.int32)

    # Reflect-pad along T (cheap: n << T).  Then out[t] = xp[t + n - k].
    xp = jnp.pad(x, ((0, 0), (0, 0), (n, n)), mode="reflect")
    Tp = T + 2 * n

    c_blk = _choose_c_block(C, Tp, x.dtype.itemsize)
    grid = (B, C // c_blk)

    # Note: for very small T (< 128 lanes) one could additionally pack several
    # batches per grid step to get lane-dense stores / amortize the ~0.35us
    # per-step overhead; at realistic WaveGAN lengths (T >= 4096) the output
    # block is already lane-dense.

    kernel = _make_phase_shuffle_kernel(n, T)

    return pl.pallas_call(
        kernel,
        out_shape=jax.ShapeDtypeStruct((B, C, T), x.dtype),
        grid_spec=pltpu.PrefetchScalarGridSpec(
            num_scalar_prefetch=1,
            grid=grid,
            in_specs=[pl.BlockSpec((1, c_blk, Tp), lambda b, c, s: (b, c, 0))],
            out_specs=pl.BlockSpec((1, c_blk, T), lambda b, c, s: (b, c, 0)),
        ),
        compiler_params=pltpu.CompilerParams(
            dimension_semantics=("parallel", "parallel")),
    )(shifts, xp)


class PhaseShuffle:
    """JAX/Pallas port of the PyTorch PhaseShuffle module."""

    def __init__(self, n):
        self.n = n

    def __call__(self, x, key):
        if self.n == 0:
            return x
        B = x.shape[0]
        # Equivalent of torch.Tensor(B).random_(0, 2n+1) - n (explicit key here).
        shifts = (jax.random.randint(key, (B,), 0, 2 * self.n + 1) - self.n
                  ).astype(jnp.int32)
        return phase_shuffle(x, shifts, self.n)


def _reference(x, shifts):
    """Pure-JAX reference matching the PyTorch reflect-pad semantics."""
    B, C, T = x.shape
    outs = []
    for b in range(B):
        k = int(shifts[b])
        s = jnp.abs(jnp.arange(T) - k)
        s = jnp.where(s > T - 1, 2 * (T - 1) - s, s)
        outs.append(x[b][:, s])
    return jnp.stack(outs, axis=0)


if __name__ == "__main__":
    key = jax.random.PRNGKey(0)
    k_x, k_shift = jax.random.split(key)

    B, C, T = 2, 4, 16
    n = 2
    x = jax.random.normal(k_x, (B, C, T), dtype=jnp.float32)

    mod = PhaseShuffle(n)
    out = jax.block_until_ready(mod(x, k_shift))

    # Correctness check against a pure-JAX reference with the same shifts.
    shifts = (jax.random.randint(k_shift, (B,), 0, 2 * n + 1) - n).astype(jnp.int32)
    ref = _reference(x, shifts)
    assert out.shape == x.shape and out.dtype == x.dtype
    assert jnp.allclose(out, ref, atol=1e-6), "mismatch vs reference"

    print("KERNEL_OK")
</pallas_src>

<mosaic_0001>
module attributes {stable_mosaic.version = 11 : i64} {
  func.func @kernel(%arg0: i32, %arg1: i32, %arg2: memref<2xi32, #tpu.memory_space<smem>>, %arg3: memref<1x4x20xf32, #tpu.memory_space<vmem>>, %arg4: memref<1x4x16xf32, #tpu.memory_space<vmem>>) attributes {dimension_semantics = [#tpu.dimension_semantics<parallel>, #tpu.dimension_semantics<parallel>], iteration_bounds = array<i64: 2, 1>, scalar_prefetch = 1 : i64, scratch_operands = 0 : i64, tpu.core_type = #tpu.core_type<tc>, window_params = [{transform_indices = @transform_0, window_bounds = array<i64: 1, 4, 20>}, {transform_indices = @transform_1, window_bounds = array<i64: 1, 4, 16>}]} {
    %0 = arith.index_cast %arg0 : i32 to index
    %1 = memref.load %arg2[%0] : memref<2xi32, #tpu.memory_space<smem>>
    %c2_i32 = arith.constant 2 : i32
    %2 = arith.subi %c2_i32, %1 : i32
    %c0 = arith.constant 0 : index
    %c0_0 = arith.constant 0 : index
    %c0_1 = arith.constant 0 : index
    %3 = vector.load %arg3[%c0, %c0_0, %c0_1] : memref<1x4x20xf32, #tpu.memory_space<vmem>>, vector<1x4x20xf32>
    %4 = vector.shape_cast %3 : vector<1x4x20xf32> to vector<4x20xf32>
    %c0_i32 = arith.constant 0 : i32
    %5 = arith.cmpi eq, %2, %c0_i32 : i32
    %6 = arith.extui %5 : i1 to i32
    %c0_i32_2 = arith.constant 0 : i32
    %7 = arith.cmpi ne, %6, %c0_i32_2 : i32
    scf.if %7 {
      %20 = vector.extract_strided_slice %4 {offsets = [0, 0], sizes = [4, 16], strides = [1, 1]} : vector<4x20xf32> to vector<4x16xf32>
      %c0_8 = arith.constant 0 : index
      %c0_9 = arith.constant 0 : index
      %c0_10 = arith.constant 0 : index
      %21 = vector.load %arg4[%c0_8, %c0_9, %c0_10] : memref<1x4x16xf32, #tpu.memory_space<vmem>>, vector<1x4x16xf32>
      %22 = vector.shape_cast %21 : vector<1x4x16xf32> to vector<4x16xf32>
      %23 = vector.shape_cast %20 : vector<4x16xf32> to vector<1x4x16xf32>
      tpu.vector_store %arg4[%c0_8, %c0_9, %c0_10], %23 {strides = array<i32>} : memref<1x4x16xf32, #tpu.memory_space<vmem>>, vector<1x4x16xf32>,
    } else {
    }
    %c1_i32 = arith.constant 1 : i32
    %8 = arith.cmpi eq, %2, %c1_i32 : i32
    %9 = arith.extui %8 : i1 to i32
    %c0_i32_3 = arith.constant 0 : i32
    %10 = arith.cmpi ne, %9, %c0_i32_3 : i32
    scf.if %10 {
      %20 = vector.extract_strided_slice %4 {offsets = [0, 1], sizes = [4, 16], strides = [1, 1]} : vector<4x20xf32> to vector<4x16xf32>
      %c0_8 = arith.constant 0 : index
      %c0_9 = arith.constant 0 : index
      %c0_10 = arith.constant 0 : index
      %21 = vector.load %arg4[%c0_8, %c0_9, %c0_10] : memref<1x4x16xf32, #tpu.memory_space<vmem>>, vector<1x4x16xf32>
      %22 = vector.shape_cast %21 : vector<1x4x16xf32> to vector<4x16xf32>
      %23 = vector.shape_cast %20 : vector<4x16xf32> to vector<1x4x16xf32>
      tpu.vector_store %arg4[%c0_8, %c0_9, %c0_10], %23 {strides = array<i32>} : memref<1x4x16xf32, #tpu.memory_space<vmem>>, vector<1x4x16xf32>,
    } else {
    }
    %c2_i32_4 = arith.constant 2 : i32
    %11 = arith.cmpi eq, %2, %c2_i32_4 : i32
    %12 = arith.extui %11 : i1 to i32
    %c0_i32_5 = arith.constant 0 : i32
    %13 = arith.cmpi ne, %12, %c0_i32_5 : i32
    scf.if %13 {
      %20 = vector.extract_strided_slice %4 {offsets = [0, 2], sizes = [4, 16], strides = [1, 1]} : vector<4x20xf32> to vector<4x16xf32>
      %c0_8 = arith.constant 0 : index
      %c0_9 = arith.constant 0 : index
      %c0_10 = arith.constant 0 : index
      %21 = vector.load %arg4[%c0_8, %c0_9, %c0_10] : memref<1x4x16xf32, #tpu.memory_space<vmem>>, vector<1x4x16xf32>
      %22 = vector.shape_cast %21 : vector<1x4x16xf32> to vector<4x16xf32>
      %23 = vector.shape_cast %20 : vector<4x16xf32> to vector<1x4x16xf32>
      tpu.vector_store %arg4[%c0_8, %c0_9, %c0_10], %23 {strides = array<i32>} : memref<1x4x16xf32, #tpu.memory_space<vmem>>, vector<1x4x16xf32>,
    } else {
    }
    %c3_i32 = arith.constant 3 : i32
    %14 = arith.cmpi eq, %2, %c3_i32 : i32
    %15 = arith.extui %14 : i1 to i32
    %c0_i32_6 = arith.constant 0 : i32
    %16 = arith.cmpi ne, %15, %c0_i32_6 : i32
    scf.if %16 {
      %20 = vector.extract_strided_slice %4 {offsets = [0, 3], sizes = [4, 16], strides = [1, 1]} : vector<4x20xf32> to vector<4x16xf32>
      %c0_8 = arith.constant 0 : index
      %c0_9 = arith.constant 0 : index
      %c0_10 = arith.constant 0 : index
      %21 = vector.load %arg4[%c0_8, %c0_9, %c0_10] : memref<1x4x16xf32, #tpu.memory_space<vmem>>, vector<1x4x16xf32>
      %22 = vector.shape_cast %21 : vector<1x4x16xf32> to vector<4x16xf32>
      %23 = vector.shape_cast %20 : vector<4x16xf32> to vector<1x4x16xf32>
      tpu.vector_store %arg4[%c0_8, %c0_9, %c0_10], %23 {strides = array<i32>} : memref<1x4x16xf32, #tpu.memory_space<vmem>>, vector<1x4x16xf32>,
    } else {
    }
    %c4_i32 = arith.constant 4 : i32
    %17 = arith.cmpi eq, %2, %c4_i32 : i32
    %18 = arith.extui %17 : i1 to i32
    %c0_i32_7 = arith.constant 0 : i32
    %19 = arith.cmpi ne, %18, %c0_i32_7 : i32
    scf.if %19 {
      %20 = vector.extract_strided_slice %4 {offsets = [0, 4], sizes = [4, 16], strides = [1, 1]} : vector<4x20xf32> to vector<4x16xf32>
      %c0_8 = arith.constant 0 : index
      %c0_9 = arith.constant 0 : index
      %c0_10 = arith.constant 0 : index
      %21 = vector.load %arg4[%c0_8, %c0_9, %c0_10] : memref<1x4x16xf32, #tpu.memory_space<vmem>>, vector<1x4x16xf32>
      %22 = vector.shape_cast %21 : vector<1x4x16xf32> to vector<4x16xf32>
      %23 = vector.shape_cast %20 : vector<4x16xf32> to vector<1x4x16xf32>
      tpu.vector_store %arg4[%c0_8, %c0_9, %c0_10], %23 {strides = array<i32>} : memref<1x4x16xf32, #tpu.memory_space<vmem>>, vector<1x4x16xf32>,
    } else {
    }
    return
  }
  func.func @transform_0(%arg0: i32, %arg1: i32, %arg2: memref<2xi32, #tpu.memory_space<smem>>) -> (i32, i32, i32) {
    %c0_i32 = arith.constant 0 : i32
    %c0_i32_0 = arith.constant 0 : i32
    return %arg0, %arg1, %c0_i32 : i32, i32, i32
  }
  func.func @transform_1(%arg0: i32, %arg1: i32, %arg2: memref<2xi32, #tpu.memory_space<smem>>) -> (i32, i32, i32) {
    %c0_i32 = arith.constant 0 : i32
    %c0_i32_0 = arith.constant 0 : i32
    return %arg0, %arg1, %c0_i32 : i32, i32, i32
  }
}

</mosaic_0001>

<llo_original>
// kernel: tpu_custom_call.1
$region0: #{tpu_custom_call.1}
  #allocation0 [shape = 'u32[]', space=smem, size = 0x4, offset = 0x4, fixed_abs, tag = 'smem constant byte address 0x4 - core index']
  #allocation1 [shape = 'u32[144,128]{1,0:T(1,128)}', space=vmem, size = 0x12000, scoped, tag = 'internal scratch']
  #allocation2 [shape = 's32[1]{0}', space=sflag, size = 0x4, scoped, tag = 'scoped memory for tpu_custom_call.1']
  #allocation3 [shape = 'u8[512]{0}', space=smem, size = 0x200, scoped, tag = 'prefetched SMEM operand 0']
  %s0 = inlined_call_operand.hbm [shape: s32[2], index: 0, kind: input, shape index: {}]
  %s1 = inlined_call_operand.hbm [shape: f32[2,4,20], index: 1, kind: input, shape index: {}]
  %s2 = inlined_call_operand.hbm [shape: f32[2,4,16], index: 2, kind: output, shape index: {}]
  %s3 = sld [smem:[#allocation0]]
  $region61: #{tpu_custom_call.1} parent=0
    _
  %s5 = ssub.s32 1, %s3
  %s6 = scalar_select 0, %s5, %s3
  %8 = dma.hbm_to_smem %s0, 16, [#allocation3], [#allocation2]
  %9 = dma.done [#allocation2], 16
  %10 = sfence
  $region1: #{tpu_custom_call.1} parent=0
    #allocation4 [shape = 'u8[4096]{0}', space=vmem, size = 0x1000, scoped, tag = 'input window, operand 1']
    #allocation5 [shape = 's32[2]{0}', space=sflag, size = 0x8, scoped, tag = 'scoped memory for tpu_custom_call.1']
    #allocation6 [shape = 's32[2]{0}', space=sflag, size = 0x8, scoped, tag = 'scoped memory for tpu_custom_call.1']
    #allocation7 [shape = 'u8[4096]{0}', space=vmem, size = 0x1000, scoped, tag = 'output window, operand 0']
    %11 = vsyncpa [#allocation5], 0
    %s12 = scalar_lea.sflag [#allocation5], 1
    %13 = vsyncpa %s12, 0
    %14 = vsyncpa [#allocation6], 0
    %s15 = scalar_lea.sflag [#allocation6], 1
    %16 = vsyncpa %s15, 0
    loop: start=0, step=1, limit=4
    $region2: #{tpu_custom_call.1} parent=1 // loop_pre_header
      _
    $region3: #{tpu_custom_call.1} parent=1 // loop_header
      %s18 = sphi 0, %s22
      %p19 = scmp.ge.s32.totalorder %s18, 4
      %s25 = sphi 0, %s37
      %s26 = sphi 0, %s33
      %s27 = sphi 0, %s25
      %s28 = sphi 0, %s26
      %s29 = sphi 0, %s27
      %s30 = sphi 0, %s28
      %s42 = sphi 0, %s44
      %s45 = sphi 0, %s42
      %s46 = sphi 0, %s45
      %s62 = sphi 0, %s46
      %s70 = sphi 0, %s72
      %s73 = sphi 0, %s70
      %s74 = sphi 0, %s73
      %s90 = sphi 0, %s74
    $region4: #{tpu_custom_call.1} parent=1 // loop_header_branch
      %21 = sbr.rel (%p19) target = $region8
    $region5: #{tpu_custom_call.1} parent=1 // loop_body
      %s23 = ssub.s32 %s18, 1
      %s24 = ssub.s32 %s18, 2
      %s31 = sadd.s32 1, %s26
      %p32 = scmp.ge.s32.totalorder %s31, 1
      %s33 = scalar_select %p32, 0, %s31
      %s34 = sadd.s32 1, %s25
      %s35 = scalar_select %p32, %s34, %s25
      %p36 = scmp.ge.s32.totalorder %s35, 2
      %s37 = scalar_select %p36, 0, %s35
      %s38 = ssub.s32 %s25, %s37
      %s39 = ssub.s32 %s26, %s33
      %s40 = sor.u32 %s38, %s39
      %p41 = scmp.eq.s32.totalorder %s40, 0
      %s43 = sadd.s32 %s42, 1
      %s44 = scalar_select %p41, %s42, %s43
      %p47 = pneg %p41
      %p48 = scmp.eq.s32.totalorder %s18, 1
      %p49 = por %p47, %p48
      %p50 = scmp.ne.s32.totalorder %s42, %s45
      %p51 = scmp.eq.s32.totalorder %s18, 0
      %p52 = por %p50, %p51
      %p53 = scmp.ne.s32.totalorder %s42, %s45
      %p54 = scmp.eq.s32.totalorder %s23, 1
      %p55 = por %p53, %p54
      %p56 = scmp.ne.s32.totalorder %s45, %s46
      %p57 = scmp.eq.s32.totalorder %s23, 0
      %p58 = por %p56, %p57
      %p59 = scmp.ne.s32.totalorder %s45, %s46
      %p60 = scmp.eq.s32.totalorder %s24, 1
      %p61 = por %p59, %p60
      %p63 = scmp.ne.s32.totalorder %s46, %s62
      %p64 = scmp.eq.s32.totalorder %s24, 0
      %p65 = por %p63, %p64
      %s66 = ssub.s32 %s25, %s37
      %s67 = ssub.s32 %s26, %s33
      %s68 = sor.u32 %s66, %s67
      %p69 = scmp.eq.s32.totalorder %s68, 0
      %s71 = sadd.s32 %s70, 1
      %s72 = scalar_select %p69, %s70, %s71
      %p75 = pneg %p69
      %p76 = scmp.eq.s32.totalorder %s18, 1
      %p77 = por %p75, %p76
      %p78 = scmp.ne.s32.totalorder %s70, %s73
      %p79 = scmp.eq.s32.totalorder %s18, 0
      %p80 = por %p78, %p79
      %p81 = scmp.ne.s32.totalorder %s70, %s73
      %p82 = scmp.eq.s32.totalorder %s23, 1
      %p83 = por %p81, %p82
      %p84 = scmp.ne.s32.totalorder %s73, %s74
      %p85 = scmp.eq.s32.totalorder %s23, 0
      %p86 = por %p84, %p85
      %p87 = scmp.ne.s32.totalorder %s73, %s74
      %p88 = scmp.eq.s32.totalorder %s24, 1
      %p89 = por %p87, %p88
      %p91 = scmp.ne.s32.totalorder %s74, %s90
      %p92 = scmp.eq.s32.totalorder %s24, 0
      %p93 = por %p91, %p92
      %p94 = scmp.le.s32.totalorder 1, %s18
      %p95 = scmp.lt.s32.totalorder %s18, 3
      %p96 = pnand %p94, %p95
      %p97 = pneg %p96
      // Predicated region
      $region9: #{tpu_custom_call.1} parent=5 // pred_check
        _
      $region10: #{tpu_custom_call.1} parent=5 // pred_check_branch
        %99 = sbr.rel (%p96) target = $region12
      $region11: #{tpu_custom_call.1} parent=5 // pred_region
        %s100 = ssub.s32 %s18, 1
      $region12: #{tpu_custom_call.1} parent=5 // pred_fallthru
        _
      %p101 = scmp.lt.s32.totalorder %s18, 2
      // Predicated region
      $region13: #{tpu_custom_call.1} parent=5 // pred_check
        %p102 = pneg %p101
      $region14: #{tpu_custom_call.1} parent=5 // pred_check_branch
        %104 = sbr.rel (%p102) target = $region16
      $region15: #{tpu_custom_call.1} parent=5 // pred_region
        // Predicated region
        $region17: #{tpu_custom_call.1} parent=15 // pred_check
          %p105 = pneg %p52
        $region18: #{tpu_custom_call.1} parent=15 // pred_check_branch
          %107 = sbr.rel (%p105) target = $region20
        $region19: #{tpu_custom_call.1} parent=15 // pred_region
          %s108 = sand.u32 %s42, 1
          %s109 = scalar_lea.sflag [#allocation5], %s108
          %s110 = sand.u32 %s42, 1
          %s111 = smul.addr %s110, 4
          %s112 = scalar_lea.vmem [#allocation4], %s111
          %s114 = ssub.s32 64, 64
          %115 = vsyncadd %s109, %s114
          %s116 = sadd.s32 %s26, %s25
          %s117 = smul.addr %s116, 64
          %s118 = scalar_lea.hbm %s1, %s117
          %s120 = sshll.u32 %s112, 4
          %s121 = int_to_ptr.vmem [resolvable:$true] %s120
          %123 = dma.hbm_to_vmem [thread:$0]  %s118, 64, %s121, %s109
        $region20: #{tpu_custom_call.1} parent=15 // pred_fallthru
          _
      $region16: #{tpu_custom_call.1} parent=5 // pred_fallthru
        _
      %p124 = scmp.le.s32.totalorder 1, %s18
      %p125 = scmp.lt.s32.totalorder %s18, 3
      %p126 = pnand %p124, %p125
      %p127 = pneg %p126
      // Predicated region
      $region21: #{tpu_custom_call.1} parent=5 // pred_check
        _
      $region22: #{tpu_custom_call.1} parent=5 // pred_check_branch
        %129 = sbr.rel (%p126) target = $region24
      $region23: #{tpu_custom_call.1} parent=5 // pred_region
        %s130 = ssub.s32 %s18, 1
        %s131 = sand.u32 %s45, 1
        %s132 = scalar_lea.sflag [#allocation5], %s131
        %s133 = sand.u32 %s45, 1
        %s134 = smul.addr %s133, 4
        %s135 = scalar_lea.vmem [#allocation4], %s134
        // Predicated region
        $region25: #{tpu_custom_call.1} parent=23 // pred_check
          %p136 = pneg %p58
        $region26: #{tpu_custom_call.1} parent=23 // pred_check_branch
          %138 = sbr.rel (%p136) target = $region28
        $region27: #{tpu_custom_call.1} parent=23 // pred_region
          %139 = dma.done %s132, 64
        $region28: #{tpu_custom_call.1} parent=23 // pred_fallthru
          _
        %s140 = sand.u32 %s45, 1
        %s141 = scalar_lea.sflag [#allocation5], %s140
        %s142 = sand.u32 %s45, 1
        %s143 = smul.addr %s142, 4
        %s144 = scalar_lea.vmem [#allocation4], %s143
        %p145 = pneg %p58
        %p146 = pneg %p55
        %p147 = pneg %p86
        %p148 = pneg %p83
        %s149 = sand.u32 %s73, 1
        %s150 = scalar_lea.sflag [#allocation6], %s149
        %s151 = sand.u32 %s73, 1
        %s152 = smul.addr %s151, 4
        %s153 = scalar_lea.vmem [#allocation7], %s152
        %s154 = sld [smem:[#allocation3 + %s27]]
        %s155 = ssub.s32 2, %s154
        %v156 = vld [vmem:[%s135] sm:$0xf]
        %p157 = scmp.eq.s32.totalorder %s155, 0
        // Predicated region
        $region29: #{tpu_custom_call.1} parent=23 // pred_check
          %p158 = pneg %p157
        $region30: #{tpu_custom_call.1} parent=23 // pred_check_branch
          %160 = sbr.rel (%p158) target = $region32
        $region31: #{tpu_custom_call.1} parent=23 // pred_region
          %vm161 = vcmask 125952
          %162 = vst.msk [vmem:[%s153] sm:$0xf] %vm161, %v156
        $region32: #{tpu_custom_call.1} parent=23 // pred_fallthru
          _
        %p163 = scmp.eq.s32.totalorder %s155, 1
        // Predicated region
        $region33: #{tpu_custom_call.1} parent=23 // pred_check
          %p164 = pneg %p163
        $region34: #{tpu_custom_call.1} parent=23 // pred_check_branch
          %166 = sbr.rel (%p164) target = $region36
        $region35: #{tpu_custom_call.1} parent=23 // pred_region
          %168 = vrot.lane.b32.xlu0 %v156, 127
          %v169 = vpop.permute.xlu0 %168
          %vm171 = vcmask 125952
          %172 = vst.msk [vmem:[%s153] sm:$0xf] %vm171, %v169
        $region36: #{tpu_custom_call.1} parent=23 // pred_fallthru
          _
        %p173 = scmp.eq.s32.totalorder %s155, 2
        // Predicated region
        $region37: #{tpu_custom_call.1} parent=23 // pred_check
          %p174 = pneg %p173
        $region38: #{tpu_custom_call.1} parent=23 // pred_check_branch
          %176 = sbr.rel (%p174) target = $region40
        $region39: #{tpu_custom_call.1} parent=23 // pred_region
          %178 = vrot.lane.b32.xlu0 %v156, 126
          %v179 = vpop.permute.xlu0 %178
          %vm181 = vcmask 125952
          %182 = vst.msk [vmem:[%s153] sm:$0xf] %vm181, %v179
        $region40: #{tpu_custom_call.1} parent=23 // pred_fallthru
          _
        %p183 = scmp.eq.s32.totalorder %s155, 3
        // Predicated region
        $region41: #{tpu_custom_call.1} parent=23 // pred_check
          %p184 = pneg %p183
        $region42: #{tpu_custom_call.1} parent=23 // pred_check_branch
          %186 = sbr.rel (%p184) target = $region44
        $region43: #{tpu_custom_call.1} parent=23 // pred_region
          %188 = vrot.lane.b32.xlu0 %v156, 125
          %v189 = vpop.permute.xlu0 %188
          %vm191 = vcmask 125952
          %192 = vst.msk [vmem:[%s153] sm:$0xf] %vm191, %v189
        $region44: #{tpu_custom_call.1} parent=23 // pred_fallthru
          _
        %p193 = scmp.eq.s32.totalorder %s155, 4
        // Predicated region
        $region45: #{tpu_custom_call.1} parent=23 // pred_check
          %p194 = pneg %p193
        $region46: #{tpu_custom_call.1} parent=23 // pred_check_branch
          %196 = sbr.rel (%p194) target = $region48
        $region47: #{tpu_custom_call.1} parent=23 // pred_region
          %198 = vrot.lane.b32.xlu0 %v156, 124
          %v199 = vpop.permute.xlu0 %198
          %vm201 = vcmask 125952
          %202 = vst.msk [vmem:[%s153] sm:$0xf] %vm201, %v199
        $region48: #{tpu_custom_call.1} parent=23 // pred_fallthru
          _
        %s203 = sand.u32 %s73, 1
        %s204 = scalar_lea.sflag [#allocation6], %s203
        %s205 = sand.u32 %s73, 1
        %s206 = smul.addr %s205, 4
        %s207 = scalar_lea.vmem [#allocation7], %s206
        // Predicated region
        $region49: #{tpu_custom_call.1} parent=23 // pred_check
          %p208 = pneg %p83
        $region50: #{tpu_custom_call.1} parent=23 // pred_check_branch
          %210 = sbr.rel (%p208) target = $region52
        $region51: #{tpu_custom_call.1} parent=23 // pred_region
          %s212 = ssub.s32 64, 64
          %213 = vsyncadd %s204, %s212
          %s214 = sadd.s32 %s28, %s27
          %s215 = smul.addr %s214, 64
          %s216 = scalar_lea.hbm %s2, %s215
          %s218 = sshll.u32 %s207, 4
          %s219 = int_to_ptr.vmem [resolvable:$true] %s218
          %221 = dma.vmem_to_hbm [thread:$0]  %s219, 64, %s216, %s204
        $region52: #{tpu_custom_call.1} parent=23 // pred_fallthru
          _
      $region24: #{tpu_custom_call.1} parent=5 // pred_fallthru
        _
      %p222 = scmp.le.s32.totalorder 2, %s18
      // Predicated region
      $region53: #{tpu_custom_call.1} parent=5 // pred_check
        %p223 = pneg %p222
      $region54: #{tpu_custom_call.1} parent=5 // pred_check_branch
        %225 = sbr.rel (%p223) target = $region56
      $region55: #{tpu_custom_call.1} parent=5 // pred_region
        %s226 = ssub.s32 %s18, 2
        // Predicated region
        $region57: #{tpu_custom_call.1} parent=55 // pred_check
          %p227 = pneg %p89
        $region58: #{tpu_custom_call.1} parent=55 // pred_check_branch
          %229 = sbr.rel (%p227) target = $region60
        $region59: #{tpu_custom_call.1} parent=55 // pred_region
          %s230 = sand.u32 %s74, 1
          %s231 = scalar_lea.sflag [#allocation6], %s230
          %s232 = sand.u32 %s74, 1
          %s233 = smul.addr %s232, 4
          %s234 = scalar_lea.vmem [#allocation7], %s233
          %235 = dma.done %s231, 64
        $region60: #{tpu_custom_call.1} parent=55 // pred_fallthru
          _
      $region56: #{tpu_custom_call.1} parent=5 // pred_fallthru
        _
    $region6: #{tpu_custom_call.1} parent=1 // loop_footer
      %s22 = sadd.s32 1, %s18
    $region7: #{tpu_custom_call.1} parent=1 // loop_footer_branch
      %17 = sbr.rel target = $region3
    $region8: #{tpu_custom_call.1} parent=1 // loop_exit
      _
    %236 = vsyncpa [#allocation5], 1
    %s237 = scalar_lea.sflag [#allocation5], 1
    %238 = vsyncpa %s237, 1
    %239 = vsyncpa [#allocation6], 1
    %s240 = scalar_lea.sflag [#allocation6], 1
    %241 = vsyncpa %s240, 1

</llo_original>
